<compile_context>
chip_gen: v5e
topology: v5e:2x2
jax: 0.10.0
libtpu: 0.0.40
codegen_flags: <defaults>
</compile_context>

<pallas_src>
import functools

import jax
import jax.numpy as jnp
from jax.experimental import pallas as pl
from jax.experimental.pallas import tpu as pltpu


def _cdiv(a, b):
    return -(-a // b)


def _int_pow(x, e):
    """Trace-time exponentiation-by-squaring for a positive integer exponent."""
    acc = None
    base = x
    while e > 0:
        if e & 1:
            acc = base if acc is None else acc * base
        e >>= 1
        if e:
            base = base * base
    return acc


def _apply_exp(sim, exp):
    if isinstance(exp, int):
        if exp == 1:
            return sim
        if exp == 0:
            return jnp.ones_like(sim)
        if exp > 1:
            return _int_pow(sim, exp)
    return sim ** exp  # non-integer / negative exponent: fall back to pow


def _cosine_kernel(lhs_ref, rhs_ref, inv_rhs_ref, *refs, exp, return_norm,
                   prescale):
    # lhs_ref: (tm, D), rhs_ref: (tn, D), inv_rhs_ref: (1, tn) f32
    # refs: sim_ref (tm, tn) [, norm_ref (1, tm)], scratch_ref
    #   scratch_ref = (tm, D) lhs.dtype  if prescale  (pre-normalized lhs tile)
    #   scratch_ref = (tm, 1) f32        otherwise    (rsqrt(|lhs|^2))
    if return_norm:
        sim_ref, norm_ref, scratch_ref = refs
    else:
        (sim_ref, scratch_ref), norm_ref = refs, None

    j = pl.program_id(2)

    # lhs-tile normalization terms are computed once per (b, i) and reused
    # across all N tiles (j is the innermost, "arbitrary" axis, so the scratch
    # and the lhs block stay resident across it even under megacore sharding
    # of the parallel b / i axes).
    @pl.when(j == 0)
    def _():
        lhs = lhs_ref[...].astype(jnp.float32)
        sumsq = jnp.sum(lhs * lhs, axis=-1, keepdims=True)          # (tm, 1)
        inv = jax.lax.rsqrt(sumsq)                                  # EUP
        if prescale:
            scratch_ref[...] = (lhs * inv).astype(scratch_ref.dtype)
        else:
            scratch_ref[...] = inv
        if norm_ref is not None:
            # Lane-dense (1, tm) store; the wrapper reshapes back to (M, 1).
            norm_ref[...] = jnp.sqrt(sumsq).reshape(norm_ref.shape).astype(
                norm_ref.dtype)

    lhs_op = scratch_ref[...] if prescale else lhs_ref[...]
    # Contract the shared last dim of both tiles directly on the MXU
    # (NT form, same as flash-attention's q@k^T; no rhs transpose materialized).
    sim = jax.lax.dot_general(
        lhs_op, rhs_ref[...],
        dimension_numbers=(((1,), (1,)), ((), ())),
        preferred_element_type=jnp.float32)                          # (tm, tn)

    if not prescale:
        sim = sim * scratch_ref[...]      # row scale, (tm, 1) broadcast
    sim = sim * inv_rhs_ref[...]          # col scale, (1, tn) broadcast
    sim = _apply_exp(sim, exp)
    sim_ref[...] = sim.astype(sim_ref.dtype)


def _round_tile(dim, cap):
    """Full dim if it fits (or is < 128); otherwise the largest 128-multiple
    <= cap. Keeps every block (8,128)-legal, including the lane-dense norm
    output whose last dim is tm."""
    if dim <= cap or dim < 128:
        return dim
    return max(128, (min(cap, dim) // 128) * 128)


def _select_tiles(M, N, D, in_bytes, out_bytes, budget, prescale,
                  tile_m, tile_n):
    def footprint(tm, tn):
        fp = (2 * tm * D * in_bytes          # lhs  (double-buffered)
              + 2 * tn * D * in_bytes        # rhs  (double-buffered)
              + 2 * tn * 4                   # inv_rhs input
              + 2 * tm * tn * out_bytes      # sim output
              + 2 * tm * in_bytes)           # lhs_norm output
        fp += (tm * D * in_bytes) if prescale else (tm * 4)   # scratch
        return fp

    caps = (512, 384, 256, 128)
    tm_cands = ([_round_tile(M, tile_m)] if tile_m is not None
                else [_round_tile(M, c) for c in caps])
    tn_cands = ([_round_tile(N, tile_n)] if tile_n is not None
                else [_round_tile(N, c) for c in caps])
    for tm in tm_cands:          # maximize tm first: fewer rhs HBM re-reads
        for tn in tn_cands:
            if footprint(tm, tn) <= budget:
                return tm, tn
    return tm_cands[-1], tn_cands[-1]


def cosine_similarity(lhs, rhs, *, exp=1, return_norm=False,
                      tile_m=None, tile_n=None, out_dtype=None):
    """Pallas TPU implementation of CosineSimilarity.forward.

    lhs: (B, M, D), rhs: (B, N, D)
    returns (similarity (B, M, N), lhs_norm (B, M, 1) or None)

    Note: like the torch reference there is no eps clamp, so all-zero rows
    produce inf/NaN similarities.
    """
    B, M, D = lhs.shape
    Br, N, Dr = rhs.shape
    assert B == Br and D == Dr, "batch / feature dims must match"

    # Integral float exponents (e.g. 2.0) become VALU multiplies, not pow.
    if isinstance(exp, float) and float(exp).is_integer():
        exp = int(exp)

    out_dtype = out_dtype or lhs.dtype
    in_bytes = jnp.dtype(lhs.dtype).itemsize
    out_bytes = jnp.dtype(out_dtype).itemsize

    # rhs inverse norms once, in the wrapper: tiny (B, 1, N) f32 side input.
    rhs_f32 = rhs.astype(jnp.float32)
    inv_rhs = jax.lax.rsqrt(jnp.sum(rhs_f32 * rhs_f32, axis=-1))[:, None, :]

    # Generation-aware VMEM sizing (v5e/v6e: 128 MiB, v7x: 64 MiB).
    try:
        vmem_cap = int(pltpu.get_tpu_info().vmem_capacity_bytes)
    except Exception:
        vmem_cap = 64 * 1024 * 1024
    vmem_limit = min(vmem_cap * 3 // 4, 112 * 1024 * 1024)
    budget = max(int(vmem_cap * 0.55), 4 * 1024 * 1024)

    prescale = D <= 256   # pre-scale resident lhs tile when D is small

    tm, tn = _select_tiles(M, N, D, in_bytes, out_bytes, budget, prescale,
                           tile_m, tile_n)
    # v7x: make sure both TensorCores get at least one parallel block.
    if tile_m is None and B * _cdiv(M, tm) < 2 and M >= 256:
        tm = max(128, _cdiv(M // 2, 128) * 128)

    grid = (B, _cdiv(M, tm), _cdiv(N, tn))

    in_specs = [
        pl.BlockSpec((None, tm, D), lambda b, i, j: (b, i, 0)),   # lhs tile
        pl.BlockSpec((None, tn, D), lambda b, i, j: (b, j, 0)),   # rhs tile
        pl.BlockSpec((None, 1, tn), lambda b, i, j: (b, 0, j)),   # inv |rhs|
    ]
    sim_spec = pl.BlockSpec((None, tm, tn), lambda b, i, j: (b, i, j))
    scratch = [pltpu.VMEM((tm, D), lhs.dtype) if prescale
               else pltpu.VMEM((tm, 1), jnp.float32)]
    cparams = pltpu.CompilerParams(
        dimension_semantics=("parallel", "parallel", "arbitrary"),
        vmem_limit_bytes=vmem_limit,
    )
    kernel = functools.partial(_cosine_kernel, exp=exp,
                               return_norm=return_norm, prescale=prescale)

    if return_norm:
        sim, norm_row = pl.pallas_call(
            kernel,
            out_shape=(
                jax.ShapeDtypeStruct((B, M, N), out_dtype),
                jax.ShapeDtypeStruct((B, 1, M), lhs.dtype),      # lane-dense
            ),
            grid_spec=pltpu.PrefetchScalarGridSpec(
                num_scalar_prefetch=0,
                grid=grid,
                in_specs=in_specs,
                out_specs=[
                    sim_spec,
                    pl.BlockSpec((None, 1, tm), lambda b, i, j: (b, 0, i)),
                ],
                scratch_shapes=scratch),
            compiler_params=cparams,
        )(lhs, rhs, inv_rhs)
        return sim, norm_row.reshape(B, M, 1)    # torch keepdim layout

    sim = pl.pallas_call(
        kernel,
        out_shape=jax.ShapeDtypeStruct((B, M, N), out_dtype),
        grid_spec=pltpu.PrefetchScalarGridSpec(
            num_scalar_prefetch=0,
            grid=grid,
            in_specs=in_specs,
            out_specs=sim_spec,
            scratch_shapes=scratch),
        compiler_params=cparams,
    )(lhs, rhs, inv_rhs)
    return sim, None


def _reference(lhs, rhs, exp=1, return_norm=False):
    lhs_norm = jnp.linalg.norm(lhs, axis=-1, keepdims=True)
    rhs_norm = jnp.linalg.norm(rhs, axis=-1, keepdims=True)
    sim = (lhs / lhs_norm) @ jnp.swapaxes(rhs / rhs_norm, -1, -2)
    sim = sim ** exp
    return sim, (lhs_norm if return_norm else None)


if __name__ == "__main__":
    key = jax.random.PRNGKey(0)
    k1, k2, k3, k4, k5, k6 = jax.random.split(key, 6)

    # --- Small shapes implied by the forward: batch=2, seq=8, hidden=32. ---
    B, M, N, D = 2, 8, 8, 32
    lhs = jax.random.normal(k1, (B, M, D), dtype=jnp.float32)
    rhs = jax.random.normal(k2, (B, N, D), dtype=jnp.float32)

    # Default module config: exp=1, return_norm=False.
    sim, lhs_norm = cosine_similarity(lhs, rhs, exp=1, return_norm=False)
    jax.block_until_ready(sim)
    assert lhs_norm is None
    ref_sim, _ = _reference(lhs, rhs, exp=1)
    assert jnp.allclose(sim, ref_sim, atol=1e-5, rtol=1e-5)

    # exp given as an integral float (coerced to int) + return_norm=True.
    sim2, norm2 = cosine_similarity(lhs, rhs, exp=2.0, return_norm=True)
    jax.block_until_ready((sim2, norm2))
    ref_sim2, ref_norm2 = _reference(lhs, rhs, exp=2, return_norm=True)
    assert jnp.allclose(sim2, ref_sim2, atol=1e-5, rtol=1e-5)
    assert jnp.allclose(norm2, ref_norm2, atol=1e-5, rtol=1e-5)

    # --- Multi-tile grid (2, 2, 3): lhs/scratch reuse across j, fixed rhs
    #     indexing, per-j inv_rhs tiles, norm write gated on j == 0. ---
    Bt, Mt, Nt, Dt = 2, 256, 384, 128
    lhs_t = jax.random.normal(k3, (Bt, Mt, Dt), dtype=jnp.float32)
    rhs_t = jax.random.normal(k4, (Bt, Nt, Dt), dtype=jnp.float32)
    sim_t, norm_t = cosine_similarity(lhs_t, rhs_t, exp=2, return_norm=True,
                                      tile_m=128, tile_n=128)
    jax.block_until_ready((sim_t, norm_t))
    ref_sim_t, ref_norm_t = _reference(lhs_t, rhs_t, exp=2, return_norm=True)
    assert jnp.allclose(sim_t, ref_sim_t, atol=1e-4, rtol=1e-4)
    assert jnp.allclose(norm_t, ref_norm_t, atol=1e-4, rtol=1e-4)

    # --- Large-D path (D > 256: post-matmul row scaling, no prescale). ---
    Bp, Mp, Np, Dp = 2, 256, 256, 384
    lhs_p = jax.random.normal(k5, (Bp, Mp, Dp), dtype=jnp.float32)
    rhs_p = jax.random.normal(k6, (Bp, Np, Dp), dtype=jnp.float32)
    sim_p, none_p = cosine_similarity(lhs_p, rhs_p, exp=3, return_norm=False,
                                      tile_m=128, tile_n=128)
    jax.block_until_ready(sim_p)
    assert none_p is None
    ref_sim_p, _ = _reference(lhs_p, rhs_p, exp=3)
    assert jnp.allclose(sim_p, ref_sim_p, atol=1e-4, rtol=1e-4)

    print("KERNEL_OK")
</pallas_src>

<mosaic_0001>
module attributes {stable_mosaic.version = 11 : i64} {
  func.func @_cosine_kernel(%arg0: i32, %arg1: i32, %arg2: i32, %arg3: memref<1x8x32xf32, #tpu.memory_space<vmem>>, %arg4: memref<1x8x32xf32, #tpu.memory_space<vmem>>, %arg5: memref<1x1x8xf32, #tpu.memory_space<vmem>>, %arg6: memref<1x8x8xf32, #tpu.memory_space<vmem>>, %arg7: memref<8x32xf32, #tpu.memory_space<vmem>>) attributes {dimension_semantics = [#tpu.dimension_semantics<parallel>, #tpu.dimension_semantics<parallel>, #tpu.dimension_semantics<arbitrary>], iteration_bounds = array<i64: 2, 1, 1>, scalar_prefetch = 0 : i64, scratch_operands = 1 : i64, tpu.core_type = #tpu.core_type<tc>, window_params = [{transform_indices = @transform_0, window_bounds = array<i64: 1, 8, 32>}, {transform_indices = @transform_1, window_bounds = array<i64: 1, 8, 32>}, {transform_indices = @transform_2, window_bounds = array<i64: 1, 1, 8>}, {transform_indices = @transform_3, window_bounds = array<i64: 1, 8, 8>}]} {
    %c0_i32 = arith.constant 0 : i32
    %0 = arith.cmpi eq, %arg2, %c0_i32 : i32
    %1 = arith.extui %0 : i1 to i32
    %c0_i32_0 = arith.constant 0 : i32
    %2 = arith.cmpi ne, %1, %c0_i32_0 : i32
    scf.if %2 {
      %c0_11 = arith.constant 0 : index
      %c0_12 = arith.constant 0 : index
      %c0_13 = arith.constant 0 : index
      %14 = vector.load %arg3[%c0_11, %c0_12, %c0_13] : memref<1x8x32xf32, #tpu.memory_space<vmem>>, vector<1x8x32xf32>
      %15 = vector.shape_cast %14 : vector<1x8x32xf32> to vector<8x32xf32>
      %16 = arith.mulf %15, %15 : vector<8x32xf32>
      %cst_14 = arith.constant dense<0.000000e+00> : vector<8xf32>
      %17 = vector.multi_reduction <add>, %16, %cst_14 [1] : vector<8x32xf32> to vector<8xf32>
      %18 = vector.shape_cast %17 : vector<8xf32> to vector<8x1xf32>
      %19 = math.rsqrt %18 : vector<8x1xf32>
      %20 = vector.broadcast %19 : vector<8x1xf32> to vector<8x32xf32>
      %21 = arith.mulf %15, %20 : vector<8x32xf32>
      %c0_15 = arith.constant 0 : index
      %c0_16 = arith.constant 0 : index
      %22 = vector.load %arg7[%c0_15, %c0_16] : memref<8x32xf32, #tpu.memory_space<vmem>>, vector<8x32xf32>
      tpu.vector_store %arg7[%c0_15, %c0_16], %21 {strides = array<i32>} : memref<8x32xf32, #tpu.memory_space<vmem>>, vector<8x32xf32>,
    } else {
    }
    %c0 = arith.constant 0 : index
    %c0_1 = arith.constant 0 : index
    %3 = vector.load %arg7[%c0, %c0_1] : memref<8x32xf32, #tpu.memory_space<vmem>>, vector<8x32xf32>
    %c0_2 = arith.constant 0 : index
    %c0_3 = arith.constant 0 : index
    %c0_4 = arith.constant 0 : index
    %4 = vector.load %arg4[%c0_2, %c0_3, %c0_4] : memref<1x8x32xf32, #tpu.memory_space<vmem>>, vector<1x8x32xf32>
    %5 = vector.shape_cast %4 : vector<1x8x32xf32> to vector<8x32xf32>
    %cst = arith.constant dense<0.000000e+00> : vector<8x8xf32>
    %6 = tpu.matmul %3, %5, %cst {dimension_numbers = #tpu.dot_dimension_numbers<[1], [1], [0], [0], [0, 0, 1, 0], [], []>} : vector<8x32xf32>, vector<8x32xf32>, vector<8x8xf32> -> vector<8x8xf32>
    %c0_5 = arith.constant 0 : index
    %c0_6 = arith.constant 0 : index
    %c0_7 = arith.constant 0 : index
    %7 = vector.load %arg5[%c0_5, %c0_6, %c0_7] : memref<1x1x8xf32, #tpu.memory_space<vmem>>, vector<1x1x8xf32>
    %8 = vector.shape_cast %7 : vector<1x1x8xf32> to vector<1x8xf32>
    %9 = vector.broadcast %8 : vector<1x8xf32> to vector<8x8xf32>
    %10 = arith.mulf %6, %9 : vector<8x8xf32>
    %c0_8 = arith.constant 0 : index
    %c0_9 = arith.constant 0 : index
    %c0_10 = arith.constant 0 : index
    %11 = vector.load %arg6[%c0_8, %c0_9, %c0_10] : memref<1x8x8xf32, #tpu.memory_space<vmem>>, vector<1x8x8xf32>
    %12 = vector.shape_cast %11 : vector<1x8x8xf32> to vector<8x8xf32>
    %13 = vector.shape_cast %10 : vector<8x8xf32> to vector<1x8x8xf32>
    tpu.vector_store %arg6[%c0_8, %c0_9, %c0_10], %13 {strides = array<i32>} : memref<1x8x8xf32, #tpu.memory_space<vmem>>, vector<1x8x8xf32>,
    return
  }
  func.func @transform_0(%arg0: i32, %arg1: i32, %arg2: i32) -> (i32, i32, i32) {
    %c0_i32 = arith.constant 0 : i32
    %c0_i32_0 = arith.constant 0 : i32
    return %arg0, %arg1, %c0_i32 : i32, i32, i32
  }
  func.func @transform_1(%arg0: i32, %arg1: i32, %arg2: i32) -> (i32, i32, i32) {
    %c0_i32 = arith.constant 0 : i32
    %c0_i32_0 = arith.constant 0 : i32
    return %arg0, %arg2, %c0_i32 : i32, i32, i32
  }
  func.func @transform_2(%arg0: i32, %arg1: i32, %arg2: i32) -> (i32, i32, i32) {
    %c0_i32 = arith.constant 0 : i32
    %c0_i32_0 = arith.constant 0 : i32
    return %arg0, %c0_i32, %arg2 : i32, i32, i32
  }
  func.func @transform_3(%arg0: i32, %arg1: i32, %arg2: i32) -> (i32, i32, i32) {
    %c0_i32 = arith.constant 0 : i32
    return %arg0, %arg1, %arg2 : i32, i32, i32
  }
}

</mosaic_0001>

<llo_original>
// kernel: tpu_custom_call.1
$region0: #{tpu_custom_call.1}
  #allocation0 [shape = 'u32[]', space=smem, size = 0x4, offset = 0x4, fixed_abs, tag = 'smem constant byte address 0x4 - core index']
  #allocation1 [shape = 'u32[72,128]{1,0:T(1,128)}', space=vmem, size = 0x9000, scoped, tag = 'internal scratch']
  #allocation2 [shape = 'f32[8,32]{1,0:T(8,128)}', space=vmem, size = 0x1000, scoped, tag = 'scratch operand']
  %s0 = inlined_call_operand.hbm [shape: f32[2,8,32], index: 0, kind: input, shape index: {}]
  %s1 = inlined_call_operand.hbm [shape: f32[2,8,32], index: 1, kind: input, shape index: {}]
  %s2 = inlined_call_operand.hbm [shape: f32[2,1,8], index: 2, kind: input, shape index: {}]
  %s3 = inlined_call_operand.hbm [shape: f32[2,8,8], index: 3, kind: output, shape index: {}]
  %s4 = sld [smem:[#allocation0]]
  $region61: #{tpu_custom_call.1} parent=0
    _
  %s6 = ssub.s32 1, %s4
  %s7 = scalar_select 0, %s6, %s4
  $region1: #{tpu_custom_call.1} parent=0
    #allocation3 [shape = 'u8[8192]{0}', space=vmem, size = 0x2000, scoped, tag = 'input window, operand 0']
    #allocation4 [shape = 's32[2]{0}', space=sflag, size = 0x8, scoped, tag = 'scoped memory for tpu_custom_call.1']
    #allocation5 [shape = 's32[2]{0}', space=sflag, size = 0x8, scoped, tag = 'scoped memory for tpu_custom_call.1']
    #allocation6 [shape = 'u8[8192]{0}', space=vmem, size = 0x2000, scoped, tag = 'input window, operand 1']
    #allocation7 [shape = 's32[2]{0}', space=sflag, size = 0x8, scoped, tag = 'scoped memory for tpu_custom_call.1']
    #allocation8 [shape = 'u8[1024]{0}', space=vmem, size = 0x400, scoped, tag = 'input window, operand 2']
    #allocation9 [shape = 'u8[8192]{0}', space=vmem, size = 0x2000, scoped, tag = 'output window, operand 0']
    %8 = vsyncpa [#allocation4], 0
    %s9 = scalar_lea.sflag [#allocation4], 1
    %10 = vsyncpa %s9, 0
    %11 = vsyncpa [#allocation7], 0
    %s12 = scalar_lea.sflag [#allocation7], 1
    %13 = vsyncpa %s12, 0
    %14 = vsyncpa [#allocation5], 0
    %s15 = scalar_lea.sflag [#allocation5], 1
    %16 = vsyncpa %s15, 0
    loop: start=0, step=1, limit=4
    $region2: #{tpu_custom_call.1} parent=1 // loop_pre_header
      _
    $region3: #{tpu_custom_call.1} parent=1 // loop_header
      %s18 = sphi 0, %s22
      %p19 = scmp.ge.s32.totalorder %s18, 4
      %s25 = sphi 0, %s44
      %s26 = sphi 0, %s40
      %s27 = sphi 0, %s36
      %s28 = sphi 0, %s25
      %s29 = sphi 0, %s26
      %s30 = sphi 0, %s27
      %s31 = sphi 0, %s28
      %s32 = sphi 0, %s29
      %s33 = sphi 0, %s30
      %s49 = sphi 0, %s51
      %s52 = sphi 0, %s49
      %s53 = sphi 0, %s52
      %s69 = sphi 0, %s53
      %s77 = sphi 0, %s79
      %s80 = sphi 0, %s77
      %s81 = sphi 0, %s80
      %s97 = sphi 0, %s81
      %s105 = sphi 0, %s107
      %s108 = sphi 0, %s105
      %s109 = sphi 0, %s108
      %s125 = sphi 0, %s109
      %s135 = sphi 0, %s137
      %s138 = sphi 0, %s135
      %s139 = sphi 0, %s138
      %s155 = sphi 0, %s139
    $region4: #{tpu_custom_call.1} parent=1 // loop_header_branch
      %21 = sbr.rel (%p19) target = $region8
    $region5: #{tpu_custom_call.1} parent=1 // loop_body
      %s23 = ssub.s32 %s18, 1
      %s24 = ssub.s32 %s18, 2
      %s34 = sadd.s32 1, %s27
      %p35 = scmp.ge.s32.totalorder %s34, 1
      %s36 = scalar_select %p35, 0, %s34
      %s37 = sadd.s32 1, %s26
      %s38 = scalar_select %p35, %s37, %s26
      %p39 = scmp.ge.s32.totalorder %s38, 1
      %s40 = scalar_select %p39, 0, %s38
      %s41 = sadd.s32 1, %s25
      %s42 = scalar_select %p39, %s41, %s25
      %p43 = scmp.ge.s32.totalorder %s42, 2
      %s44 = scalar_select %p43, 0, %s42
      %s45 = ssub.s32 %s25, %s44
      %s46 = ssub.s32 %s26, %s40
      %s47 = sor.u32 %s45, %s46
      %p48 = scmp.eq.s32.totalorder %s47, 0
      %s50 = sadd.s32 %s49, 1
      %s51 = scalar_select %p48, %s49, %s50
      %p54 = pneg %p48
      %p55 = scmp.eq.s32.totalorder %s18, 1
      %p56 = por %p54, %p55
      %p57 = scmp.ne.s32.totalorder %s49, %s52
      %p58 = scmp.eq.s32.totalorder %s18, 0
      %p59 = por %p57, %p58
      %p60 = scmp.ne.s32.totalorder %s49, %s52
      %p61 = scmp.eq.s32.totalorder %s23, 1
      %p62 = por %p60, %p61
      %p63 = scmp.ne.s32.totalorder %s52, %s53
      %p64 = scmp.eq.s32.totalorder %s23, 0
      %p65 = por %p63, %p64
      %p66 = scmp.ne.s32.totalorder %s52, %s53
      %p67 = scmp.eq.s32.totalorder %s24, 1
      %p68 = por %p66, %p67
      %p70 = scmp.ne.s32.totalorder %s53, %s69
      %p71 = scmp.eq.s32.totalorder %s24, 0
      %p72 = por %p70, %p71
      %s73 = ssub.s32 %s25, %s44
      %s74 = ssub.s32 %s27, %s36
      %s75 = sor.u32 %s73, %s74
      %p76 = scmp.eq.s32.totalorder %s75, 0
      %s78 = sadd.s32 %s77, 1
      %s79 = scalar_select %p76, %s77, %s78
      %p82 = pneg %p76
      %p83 = scmp.eq.s32.totalorder %s18, 1
      %p84 = por %p82, %p83
      %p85 = scmp.ne.s32.totalorder %s77, %s80
      %p86 = scmp.eq.s32.totalorder %s18, 0
      %p87 = por %p85, %p86
      %p88 = scmp.ne.s32.totalorder %s77, %s80
      %p89 = scmp.eq.s32.totalorder %s23, 1
      %p90 = por %p88, %p89
      %p91 = scmp.ne.s32.totalorder %s80, %s81
      %p92 = scmp.eq.s32.totalorder %s23, 0
      %p93 = por %p91, %p92
      %p94 = scmp.ne.s32.totalorder %s80, %s81
      %p95 = scmp.eq.s32.totalorder %s24, 1
      %p96 = por %p94, %p95
      %p98 = scmp.ne.s32.totalorder %s81, %s97
      %p99 = scmp.eq.s32.totalorder %s24, 0
      %p100 = por %p98, %p99
      %s101 = ssub.s32 %s25, %s44
      %s102 = ssub.s32 %s27, %s36
      %s103 = sor.u32 %s101, %s102
      %p104 = scmp.eq.s32.totalorder %s103, 0
      %s106 = sadd.s32 %s105, 1
      %s107 = scalar_select %p104, %s105, %s106
      %p110 = pneg %p104
      %p111 = scmp.eq.s32.totalorder %s18, 1
      %p112 = por %p110, %p111
      %p113 = scmp.ne.s32.totalorder %s105, %s108
      %p114 = scmp.eq.s32.totalorder %s18, 0
      %p115 = por %p113, %p114
      %p116 = scmp.ne.s32.totalorder %s105, %s108
      %p117 = scmp.eq.s32.totalorder %s23, 1
      %p118 = por %p116, %p117
      %p119 = scmp.ne.s32.totalorder %s108, %s109
      %p120 = scmp.eq.s32.totalorder %s23, 0
      %p121 = por %p119, %p120
      %p122 = scmp.ne.s32.totalorder %s108, %s109
      %p123 = scmp.eq.s32.totalorder %s24, 1
      %p124 = por %p122, %p123
      %p126 = scmp.ne.s32.totalorder %s109, %s125
      %p127 = scmp.eq.s32.totalorder %s24, 0
      %p128 = por %p126, %p127
      %s129 = ssub.s32 %s25, %s44
      %s130 = ssub.s32 %s26, %s40
      %s131 = sor.u32 %s129, %s130
      %s132 = ssub.s32 %s27, %s36
      %s133 = sor.u32 %s131, %s132
      %p134 = scmp.eq.s32.totalorder %s133, 0
      %s136 = sadd.s32 %s135, 1
      %s137 = scalar_select %p134, %s135, %s136
      %p140 = pneg %p134
      %p141 = scmp.eq.s32.totalorder %s18, 1
      %p142 = por %p140, %p141
      %p143 = scmp.ne.s32.totalorder %s135, %s138
      %p144 = scmp.eq.s32.totalorder %s18, 0
      %p145 = por %p143, %p144
      %p146 = scmp.ne.s32.totalorder %s135, %s138
      %p147 = scmp.eq.s32.totalorder %s23, 1
      %p148 = por %p146, %p147
      %p149 = scmp.ne.s32.totalorder %s138, %s139
      %p150 = scmp.eq.s32.totalorder %s23, 0
      %p151 = por %p149, %p150
      %p152 = scmp.ne.s32.totalorder %s138, %s139
      %p153 = scmp.eq.s32.totalorder %s24, 1
      %p154 = por %p152, %p153
      %p156 = scmp.ne.s32.totalorder %s139, %s155
      %p157 = scmp.eq.s32.totalorder %s24, 0
      %p158 = por %p156, %p157
      %p159 = scmp.le.s32.totalorder 1, %s18
      %p160 = scmp.lt.s32.totalorder %s18, 3
      %p161 = pnand %p159, %p160
      %p162 = pneg %p161
      // Predicated region
      $region9: #{tpu_custom_call.1} parent=5 // pred_check
        _
      $region10: #{tpu_custom_call.1} parent=5 // pred_check_branch
        %164 = sbr.rel (%p161) target = $region12
      $region11: #{tpu_custom_call.1} parent=5 // pred_region
        %s165 = ssub.s32 %s18, 1
      $region12: #{tpu_custom_call.1} parent=5 // pred_fallthru
        _
      %p166 = scmp.lt.s32.totalorder %s18, 2
      // Predicated region
      $region13: #{tpu_custom_call.1} parent=5 // pred_check
        %p167 = pneg %p166
      $region14: #{tpu_custom_call.1} parent=5 // pred_check_branch
        %169 = sbr.rel (%p167) target = $region16
      $region15: #{tpu_custom_call.1} parent=5 // pred_region
        // Predicated region
        $region17: #{tpu_custom_call.1} parent=15 // pred_check
          %p170 = pneg %p59
        $region18: #{tpu_custom_call.1} parent=15 // pred_check_branch
          %172 = sbr.rel (%p170) target = $region20
        $region19: #{tpu_custom_call.1} parent=15 // pred_region
          %s173 = sand.u32 %s49, 1
          %s174 = scalar_lea.sflag [#allocation4], %s173
          %s175 = sand.u32 %s49, 1
          %s176 = smul.addr %s175, 8
          %s177 = scalar_lea.vmem [#allocation3], %s176
          %179 = vsyncadd %s174, 0
          %s180 = sadd.s32 %s26, %s25
          %s181 = smul.addr %s180, 8
          %s182 = scalar_lea.hbm %s0, %s181
          %s184 = sshll.u32 %s182, 4
          %s185 = int_to_ptr.hbm [resolvable:$true] %s184
          %s186 = sshll.u32 %s177, 4
          %s187 = int_to_ptr.vmem [resolvable:$true] %s186
          %189 = dma.hbm_to_vmem [thread:$0]  %s185, 128, %s187, %s174
        $region20: #{tpu_custom_call.1} parent=15 // pred_fallthru
          _
        // Predicated region
        $region21: #{tpu_custom_call.1} parent=15 // pred_check
          %p190 = pneg %p87
        $region22: #{tpu_custom_call.1} parent=15 // pred_check_branch
          %192 = sbr.rel (%p190) target = $region24
        $region23: #{tpu_custom_call.1} parent=15 // pred_region
          %s193 = sand.u32 %s18, 1
          %s194 = scalar_lea.sflag [#allocation7], %s193
          %s195 = sand.u32 %s77, 1
          %s196 = smul.addr %s195, 8
          %s197 = scalar_lea.vmem [#allocation6], %s196
          %199 = vsyncadd %s194, 0
          %s200 = sadd.s32 %s27, %s25
          %s201 = smul.addr %s200, 8
          %s202 = scalar_lea.hbm %s1, %s201
          %s204 = sshll.u32 %s202, 4
          %s205 = int_to_ptr.hbm [resolvable:$true] %s204
          %s206 = sshll.u32 %s197, 4
          %s207 = int_to_ptr.vmem [resolvable:$true] %s206
          %209 = dma.hbm_to_vmem [thread:$0]  %s205, 128, %s207, %s194
        $region24: #{tpu_custom_call.1} parent=15 // pred_fallthru
          _
        // Predicated region
        $region25: #{tpu_custom_call.1} parent=15 // pred_check
          %p210 = pneg %p115
        $region26: #{tpu_custom_call.1} parent=15 // pred_check_branch
          %212 = sbr.rel (%p210) target = $region28
        $region27: #{tpu_custom_call.1} parent=15 // pred_region
          %s213 = sand.u32 %s18, 1
          %s214 = scalar_lea.sflag [#allocation7], %s213
          %s215 = sand.u32 %s105, 1
          %s216 = scalar_lea.vmem [#allocation8], %s215
          %218 = vsyncadd %s214, 0
          %s219 = sadd.s32 %s27, %s25
          %s220 = scalar_lea.hbm %s2, %s219
          %s222 = sshll.u32 %s220, 4
          %s223 = int_to_ptr.hbm [resolvable:$true] %s222
          %s224 = sshll.u32 %s216, 4
          %s225 = int_to_ptr.vmem [resolvable:$true] %s224
          %227 = dma.hbm_to_vmem [thread:$0]  %s223, 16, %s225, %s214
        $region28: #{tpu_custom_call.1} parent=15 // pred_fallthru
          _
      $region16: #{tpu_custom_call.1} parent=5 // pred_fallthru
        _
      %p228 = scmp.le.s32.totalorder 1, %s18
      %p229 = scmp.lt.s32.totalorder %s18, 3
      %p230 = pnand %p228, %p229
      %p231 = pneg %p230
      // Predicated region
      $region29: #{tpu_custom_call.1} parent=5 // pred_check
        _
      $region30: #{tpu_custom_call.1} parent=5 // pred_check_branch
        %233 = sbr.rel (%p230) target = $region32
      $region31: #{tpu_custom_call.1} parent=5 // pred_region
        %s234 = ssub.s32 %s18, 1
        %s235 = sand.u32 %s52, 1
        %s236 = scalar_lea.sflag [#allocation4], %s235
        %s237 = sand.u32 %s52, 1
        %s238 = smul.addr %s237, 8
        %s239 = scalar_lea.vmem [#allocation3], %s238
        // Predicated region
        $region33: #{tpu_custom_call.1} parent=31 // pred_check
          %p240 = pneg %p65
        $region34: #{tpu_custom_call.1} parent=31 // pred_check_branch
          %242 = sbr.rel (%p240) target = $region36
        $region35: #{tpu_custom_call.1} parent=31 // pred_region
          %244 = dma.done %s236, 128
        $region36: #{tpu_custom_call.1} parent=31 // pred_fallthru
          _
        %s245 = sand.u32 %s23, 1
        %s246 = scalar_lea.sflag [#allocation7], %s245
        %s247 = sand.u32 %s80, 1
        %s248 = smul.addr %s247, 8
        %s249 = scalar_lea.vmem [#allocation6], %s248
        // Predicated region
        $region37: #{tpu_custom_call.1} parent=31 // pred_check
          %p250 = pneg %p93
        $region38: #{tpu_custom_call.1} parent=31 // pred_check_branch
          %252 = sbr.rel (%p250) target = $region40
        $region39: #{tpu_custom_call.1} parent=31 // pred_region
          %254 = dma.done %s246, 128
        $region40: #{tpu_custom_call.1} parent=31 // pred_fallthru
          _
        %s255 = sand.u32 %s23, 1
        %s256 = scalar_lea.sflag [#allocation7], %s255
        %s257 = sand.u32 %s108, 1
        %s258 = scalar_lea.vmem [#allocation8], %s257
        // Predicated region
        $region41: #{tpu_custom_call.1} parent=31 // pred_check
          %p259 = pneg %p121
        $region42: #{tpu_custom_call.1} parent=31 // pred_check_branch
          %261 = sbr.rel (%p259) target = $region44
        $region43: #{tpu_custom_call.1} parent=31 // pred_region
          %263 = dma.done %s256, 16
        $region44: #{tpu_custom_call.1} parent=31 // pred_fallthru
          _
        %s264 = sand.u32 %s52, 1
        %s265 = scalar_lea.sflag [#allocation4], %s264
        %s266 = sand.u32 %s52, 1
        %s267 = smul.addr %s266, 8
        %s268 = scalar_lea.vmem [#allocation3], %s267
        %p269 = pneg %p65
        %p270 = pneg %p62
        %s271 = sand.u32 %s23, 1
        %s272 = scalar_lea.sflag [#allocation7], %s271
        %s273 = sand.u32 %s80, 1
        %s274 = smul.addr %s273, 8
        %s275 = scalar_lea.vmem [#allocation6], %s274
        %p276 = pneg %p93
        %p277 = pneg %p90
        %s278 = sand.u32 %s23, 1
        %s279 = scalar_lea.sflag [#allocation7], %s278
        %s280 = sand.u32 %s108, 1
        %s281 = scalar_lea.vmem [#allocation8], %s280
        %p282 = pneg %p121
        %p283 = pneg %p118
        %p284 = pneg %p151
        %p285 = pneg %p148
        %s286 = sand.u32 %s138, 1
        %s287 = scalar_lea.sflag [#allocation5], %s286
        %s288 = sand.u32 %s138, 1
        %s289 = smul.addr %s288, 8
        %s290 = scalar_lea.vmem [#allocation9], %s289
        %p291 = scmp.eq.s32.totalorder %s30, 0
        // Predicated region
        $region45: #{tpu_custom_call.1} parent=31 // pred_check
          %p292 = pneg %p291
        $region46: #{tpu_custom_call.1} parent=31 // pred_check_branch
          %294 = sbr.rel (%p292) target = $region48
        $region47: #{tpu_custom_call.1} parent=31 // pred_region
          %v295 = vld [vmem:[%s239] sm:$0xff]
          %v296 = vmul.f32 %v295, %v295
          %vm297 = vcmask 261120
          %v298 = vsel %vm297, %v296, 0.0
          %299 = vadd.xlane.f32.xlu0 %v298
          %v300 = vpop.xlane.xlu0 %299
          %v301 = vrsqrt.pop %v300
          %v302 = vmul.f32 %v301, %v300
          %v303 = vmul.f32 %v302, %v301
          %v304 = vmul.f32 0.5, %v303
          %v305 = vsub.f32 1.5, %v304
          %v306 = vmul.f32 %v301, %v305
          %vm307 = vweird.f32 %v300
          %vm308 = vweird.f32 %v301
          %vm309 = vmor %vm307, %vm308
          %v310 = vsel %vm309, %v301, %v306
          %v311 = vmul.f32 %v295, %v310
          %312 = vst.msk [vmem:[#allocation2] sm:$0xff] %vm297, %v311
        $region48: #{tpu_custom_call.1} parent=31 // pred_fallthru
          _
        %v313 = vld [vmem:[#allocation2] sm:$0xff]
        %v314 = vld [vmem:[%s249] sm:$0xff]
        %vm315 = vcmask 261120
        %v317 = vsel %vm315, %v313, 0
        %v320 = vsel %vm315, %v314, 0
        %322 = vmatpush.xpose.msra.mxu0 0.0
        %323 = vmatpush.xpose.msra.mxu0 0.0
        %324 = vmatpush.xpose.msra.mxu0 0.0
        %325 = vmatpush.xpose.msra.mxu0 0.0
        %326 = vmatpush.xpose.msra.mxu0 0.0
        %327 = vmatpush.xpose.msra.mxu0 0.0
        %328 = vmatpush.xpose.msra.mxu0 0.0
        %329 = vmatpush.xpose.msra.mxu0 0.0
        %330 = vmatpush.xpose.msra.mxu0 0.0
        %331 = vmatpush.xpose.msra.mxu0 0.0
        %332 = vmatpush.xpose.msra.mxu0 0.0
        %333 = vmatpush.xpose.msra.mxu0 0.0
        %334 = vmatpush.xpose.msra.mxu0 0.0
        %335 = vmatpush.xpose.msra.mxu0 0.0
        %336 = vmatpush.xpose.msra.mxu0 0.0
        %337 = vmatpush.xpose.msra.mxu0 %v320
        %338 = vmatmul.f32.gmra.mxu0 %v317
        %v339 = vpop.f32.mrf.mxu0
        %v340 = vadd.f32 0.0, %v339
        %341 = vdwg.mxu0
        %v342 = vld [vmem:[%s258] sm:$0x1]
        %v344 = vperm.slane %v342, 0
        %v346 = vmul.f32 %v340, %v344
        %vm347 = vcmask 64512
        %348 = vst.msk [vmem:[%s290] sm:$0xff] %vm347, %v346
        %s349 = sand.u32 %s138, 1
        %s350 = scalar_lea.sflag [#allocation5], %s349
        %s351 = sand.u32 %s138, 1
        %s352 = smul.addr %s351, 8
        %s353 = scalar_lea.vmem [#allocation9], %s352
        // Predicated region
        $region49: #{tpu_custom_call.1} parent=31 // pred_check
          %p354 = pneg %p148
        $region50: #{tpu_custom_call.1} parent=31 // pred_check_branch
          %356 = sbr.rel (%p354) target = $region52
        $region51: #{tpu_custom_call.1} parent=31 // pred_region
          %358 = vsyncadd %s350, 0
          %s359 = sadd.s32 %s30, %s29
          %s360 = sadd.s32 %s359, %s28
          %s361 = smul.addr %s360, 8
          %s362 = scalar_lea.hbm %s3, %s361
          %s364 = sshll.u32 %s353, 4
          %s365 = int_to_ptr.vmem [resolvable:$true] %s364
          %s366 = sshll.u32 %s362, 4
          %s367 = int_to_ptr.hbm [resolvable:$true] %s366
          %369 = dma.vmem_to_hbm [thread:$0]  %s365, 128, %s367, %s350
        $region52: #{tpu_custom_call.1} parent=31 // pred_fallthru
          _
      $region32: #{tpu_custom_call.1} parent=5 // pred_fallthru
        _
      %p370 = scmp.le.s32.totalorder 2, %s18
      // Predicated region
      $region53: #{tpu_custom_call.1} parent=5 // pred_check
        %p371 = pneg %p370
      $region54: #{tpu_custom_call.1} parent=5 // pred_check_branch
        %373 = sbr.rel (%p371) target = $region56
      $region55: #{tpu_custom_call.1} parent=5 // pred_region
        %s374 = ssub.s32 %s18, 2
        // Predicated region
        $region57: #{tpu_custom_call.1} parent=55 // pred_check
          %p375 = pneg %p154
        $region58: #{tpu_custom_call.1} parent=55 // pred_check_branch
          %377 = sbr.rel (%p375) target = $region60
        $region59: #{tpu_custom_call.1} parent=55 // pred_region
          %s378 = sand.u32 %s139, 1
          %s379 = scalar_lea.sflag [#allocation5], %s378
          %s380 = sand.u32 %s139, 1
          %s381 = smul.addr %s380, 8
          %s382 = scalar_lea.vmem [#allocation9], %s381
          %384 = dma.done %s379, 128
        $region60: #{tpu_custom_call.1} parent=55 // pred_fallthru
          _
      $region56: #{tpu_custom_call.1} parent=5 // pred_fallthru
        _
    $region6: #{tpu_custom_call.1} parent=1 // loop_footer
      %s22 = sadd.s32 1, %s18
    $region7: #{tpu_custom_call.1} parent=1 // loop_footer_branch
      %17 = sbr.rel target = $region3
    $region8: #{tpu_custom_call.1} parent=1 // loop_exit
      _
    %385 = vsyncpa [#allocation4], 1
    %s386 = scalar_lea.sflag [#allocation4], 1
    %387 = vsyncpa %s386, 1
    %388 = vsyncpa [#allocation7], 1
    %s389 = scalar_lea.sflag [#allocation7], 1
    %390 = vsyncpa %s389, 1
    %391 = vsyncpa [#allocation5], 1
    %s392 = scalar_lea.sflag [#allocation5], 1
    %393 = vsyncpa %s392, 1

</llo_original>
